<compile_context>
chip_gen: v7x
topology: tpu7x:2x2x1
jax: 0.10.0
libtpu: 0.0.40
codegen_flags: <defaults>
</compile_context>

<pallas_src>
import functools
import math

import jax
import jax.numpy as jnp
from jax.experimental import pallas as pl
from jax.experimental.pallas import tpu as pltpu

# Constants from SwiGLUOp.__init__: self.w = 1, self.v = 2
_W = 1.0
_V = 2.0


def _swiglu_kernel(x_ref, o_ref, *, compute_dtype):
    # x_ref / o_ref: (TM, C) lane-dense tiles in VMEM.
    x = x_ref[...].astype(compute_dtype)
    # w == 1 folded away: sigmoid(x) * 1 + x * 2  ->  sigmoid(x) + 2 * x
    o_ref[...] = (jax.nn.sigmoid(x) + _V * x).astype(o_ref.dtype)


def _chip_params():
    """Per-generation tile-byte budget / VMEM limit / bf16-native-compute flag."""
    kind = ""
    try:
        kind = jax.devices()[0].device_kind.lower()
    except Exception:
        pass
    if "v7" in kind:
        # 8 MiB blocks; 4 double-buffered (in+out) = 32 MiB > 32 MiB default
        # scoped limit but well under 64 MiB physical -> raise limit.
        return {"block_bytes": 8 << 20, "vmem_limit": 48 << 20, "native_bf16": True}
    if "v6" in kind:
        # 4 MiB blocks; 16 MiB double-buffered fits the 32 MiB default.
        return {"block_bytes": 4 << 20, "vmem_limit": 32 << 20, "native_bf16": True}
    # v5e (and unknown chips): conservative 2 MiB blocks, no bf16 VPU/EUP.
    return {"block_bytes": 2 << 20, "vmem_limit": 32 << 20, "native_bf16": False}


def _as_lane_dense_2d(x, lane_width):
    """Lay x out as a lane-dense (rows, C) slab, avoiding padding when possible.

    Returns (x2d, rows, c). rows*c may exceed x.size only on the ragged slow path.
    """
    shape = x.shape
    n = math.prod(shape) if shape else 1

    # Fast path A: some suffix of the shape already has a product that is a
    # multiple of 128 (and not absurdly wide) -> pure reshape, no padding.
    trailing = 1
    for d in reversed(shape):
        trailing *= d
        if trailing % 128 == 0 and trailing <= 8192:
            return x.reshape(n // trailing, trailing), n // trailing, trailing

    # Fast path B: the flat size divides evenly by a lane-dense width.
    for c in (lane_width, 256, 128):
        if n % c == 0:
            return x.reshape(n // c, c), n // c, c

    # Slow path (ragged total size only): pad the flat tail.
    c = lane_width
    rows = -(-n // c)
    flat = jnp.pad(x.reshape(-1), (0, rows * c - n))
    return flat.reshape(rows, c), rows, c


def swiglu_op(x, *, lane_width=512):
    """Pallas TPU equivalent of SwiGLUOp.forward: sigmoid(x)*1 + x*2 (elementwise)."""
    orig_shape = x.shape
    n = math.prod(orig_shape) if orig_shape else 1
    if n == 0:
        return x

    params = _chip_params()
    itemsize = jnp.dtype(x.dtype).itemsize

    x2d, rows, c = _as_lane_dense_2d(x, lane_width)

    # Row-tile sized to the per-chip byte budget; multiple of 8 sublanes,
    # or the full rows extent if the array is smaller than one tile.
    tm = params["block_bytes"] // (c * itemsize)
    tm = max(8, (tm // 8) * 8)
    if tm >= rows:
        tm = rows
    grid = (pl.cdiv(rows, tm),)

    # bf16-native compute where the VPU/EUP support it (v6e/v7x); otherwise f32.
    if x.dtype == jnp.bfloat16 and params["native_bf16"]:
        compute_dtype = jnp.bfloat16
    else:
        compute_dtype = jnp.float32

    kernel = functools.partial(_swiglu_kernel, compute_dtype=compute_dtype)

    out2d = pl.pallas_call(
        kernel,
        out_shape=jax.ShapeDtypeStruct((rows, c), x.dtype),
        grid_spec=pltpu.PrefetchScalarGridSpec(
            num_scalar_prefetch=0,
            grid=grid,
            in_specs=[pl.BlockSpec((tm, c), lambda i: (i, 0))],
            out_specs=pl.BlockSpec((tm, c), lambda i: (i, 0)),
        ),
        compiler_params=pltpu.CompilerParams(
            dimension_semantics=("parallel",),       # independent tiles -> megacore shardable
            vmem_limit_bytes=params["vmem_limit"],
        ),
        cost_estimate=pl.CostEstimate(
            flops=3 * n,
            transcendentals=n,
            bytes_accessed=2 * n * itemsize,
        ),
    )(x2d)

    if rows * c == n:
        return out2d.reshape(orig_shape)
    # Ragged slow path only: strip the padded tail.
    return out2d.reshape(-1)[:n].reshape(orig_shape)


if __name__ == "__main__":
    key = jax.random.PRNGKey(0)

    # Shape consistent with the elementwise module (batch=2, channels=4, 16x16).
    x = jax.random.normal(key, (2, 4, 16, 16), dtype=jnp.float32)
    out = jax.block_until_ready(swiglu_op(x))
    ref = jax.nn.sigmoid(x) * _W + x * _V
    assert out.shape == ref.shape, (out.shape, ref.shape)
    assert jnp.allclose(out, ref, atol=1e-6, rtol=1e-6)

    # Small ragged shape to exercise the padded fallback path.
    x2 = jax.random.normal(jax.random.PRNGKey(1), (3, 5, 7), dtype=jnp.float32)
    out2 = jax.block_until_ready(swiglu_op(x2))
    ref2 = jax.nn.sigmoid(x2) * _W + x2 * _V
    assert out2.shape == ref2.shape, (out2.shape, ref2.shape)
    assert jnp.allclose(out2, ref2, atol=1e-6, rtol=1e-6)

    print("KERNEL_OK")
</pallas_src>

<mosaic_0001>
module attributes {stable_mosaic.version = 11 : i64} {
  func.func @_swiglu_kernel(%arg0: i32, %arg1: memref<8x256xf32, #tpu.memory_space<vmem>>, %arg2: memref<8x256xf32, #tpu.memory_space<vmem>>) attributes {dimension_semantics = [#tpu.dimension_semantics<parallel>], iteration_bounds = array<i64: 1>, scalar_prefetch = 0 : i64, scratch_operands = 0 : i64, tpu.core_type = #tpu.core_type<tc>, window_params = [{transform_indices = @transform_0, window_bounds = array<i64: 8, 256>}, {transform_indices = @transform_1, window_bounds = array<i64: 8, 256>}]} {
    %c0 = arith.constant 0 : index
    %c0_0 = arith.constant 0 : index
    %0 = vector.load %arg1[%c0, %c0_0] : memref<8x256xf32, #tpu.memory_space<vmem>>, vector<8x256xf32>
    %1 = arith.negf %0 : vector<8x256xf32>
    %2 = math.exp %1 : vector<8x256xf32>
    %cst = arith.constant 1.000000e+00 : f32
    %3 = vector.broadcast %cst : f32 to vector<8x256xf32>
    %4 = arith.addf %3, %2 : vector<8x256xf32>
    %5 = arith.divf %3, %4 : vector<8x256xf32>
    %cst_1 = arith.constant 2.000000e+00 : f32
    %6 = vector.broadcast %cst_1 : f32 to vector<8x256xf32>
    %7 = arith.mulf %6, %0 : vector<8x256xf32>
    %8 = arith.addf %5, %7 : vector<8x256xf32>
    %c0_2 = arith.constant 0 : index
    %c0_3 = arith.constant 0 : index
    %9 = vector.load %arg2[%c0_2, %c0_3] : memref<8x256xf32, #tpu.memory_space<vmem>>, vector<8x256xf32>
    tpu.vector_store %arg2[%c0_2, %c0_3], %8 {strides = array<i32>} : memref<8x256xf32, #tpu.memory_space<vmem>>, vector<8x256xf32>,
    return
  }
  func.func @transform_0(%arg0: i32) -> (i32, i32) {
    %c0_i32 = arith.constant 0 : i32
    %c0_i32_0 = arith.constant 0 : i32
    return %arg0, %c0_i32 : i32, i32
  }
  func.func @transform_1(%arg0: i32) -> (i32, i32) {
    %c0_i32 = arith.constant 0 : i32
    %c0_i32_0 = arith.constant 0 : i32
    return %arg0, %c0_i32 : i32, i32
  }
}

</mosaic_0001>

<llo_original>
// kernel: tpu_custom_call.1
$region0: #{tpu_custom_call.1}
  #allocation0 [shape = 'u32[]', space=smem, size = 0x4, offset = 0x4, fixed_abs, tag = 'smem constant byte address 0x4 - core index']
  #allocation1 [shape = 'u32[144,128]{1,0:T(1,128)}', space=vmem, size = 0x12000, scoped, tag = 'internal scratch']
  %s0 = inlined_call_operand.hbm [shape: f32[8,256], index: 0, kind: input, shape index: {}]
  %s1 = inlined_call_operand.hbm [shape: f32[8,256], index: 1, kind: output, shape index: {}]
  %s2 = sld [smem:[#allocation0]]
  $region18: #{tpu_custom_call.1} parent=0
    _
  %s4 = ssub.s32 1, %s2
  %s5 = scalar_select 0, %s4, %s2
  $region1: #{tpu_custom_call.1} parent=0
    #allocation2 [shape = 'u8[8192]{0}', space=vmem, size = 0x2000, scoped, tag = 'input window, operand 0, single buffered']
    #allocation3 [shape = 's32[1]{0}', space=sflag, size = 0x4, scoped, tag = 'scoped memory for tpu_custom_call.1']
    #allocation4 [shape = 's32[1]{0}', space=sflag, size = 0x4, scoped, tag = 'scoped memory for tpu_custom_call.1']
    #allocation5 [shape = 'u8[8192]{0}', space=vmem, size = 0x2000, scoped, tag = 'output window, operand 0, single buffered']
    %6 = vsyncpa [#allocation3], 0
    %7 = vsyncpa [#allocation4], 0
    // Predicated region
    $region2: #{tpu_custom_call.1} parent=1 // pred_check
      _
    $region3: #{tpu_custom_call.1} parent=1 // pred_check_branch
      %9 = sbr.rel (0) target = $region5
    $region4: #{tpu_custom_call.1} parent=1 // pred_region
      %s11 = ssub.s32 256, 256
      %12 = vsyncadd [#allocation3], %s11
      %s14 = sshll.u32 [#allocation2], 4
      %s15 = int_to_ptr.vmem [resolvable:$true] %s14
      %17 = dma.hbm_to_vmem [thread:$0]  %s0, 256, %s15, [#allocation3]
    $region5: #{tpu_custom_call.1} parent=1 // pred_fallthru
      _
    // Predicated region
    $region6: #{tpu_custom_call.1} parent=1 // pred_check
      _
    $region7: #{tpu_custom_call.1} parent=1 // pred_check_branch
      %19 = sbr.rel (0) target = $region9
    $region8: #{tpu_custom_call.1} parent=1 // pred_region
      %20 = dma.done [#allocation3], 256
    $region9: #{tpu_custom_call.1} parent=1 // pred_fallthru
      _
    %v21 = vld [vmem:[#allocation2] sm:$0xff]
    %v22 = vld [vmem:[#allocation2 + $0x8] sm:$0xff]
    %v23 = vxor.u32 %v21, 2147483648
    %v24 = vxor.u32 %v22, 2147483648
    %v25 = vmul.f32 %v23, 1.442695
    %v26 = vpow.pop %v25
    %v27 = vmul.f32 %v24, 1.442695
    %v28 = vpow.pop %v27
    %v29 = vadd.f32 %v26, 1.0
    %v30 = vadd.f32 %v28, 1.0
    %v31 = vrcp.pop %v29
    %v32 = vmul.f32 1.0, %v31
    %v33 = vrcp.pop %v30
    %v34 = vmul.f32 1.0, %v33
    %v35 = vmul.f32 %v21, 2.0
    %v36 = vmul.f32 %v22, 2.0
    %v37 = vadd.f32 %v32, %v35
    %v38 = vadd.f32 %v34, %v36
    %39 = vst [vmem:[#allocation5] sm:$0xff] %v37
    %40 = vst [vmem:[#allocation5 + $0x8] sm:$0xff] %v38
    // Predicated region
    $region10: #{tpu_custom_call.1} parent=1 // pred_check
      _
    $region11: #{tpu_custom_call.1} parent=1 // pred_check_branch
      %42 = sbr.rel (0) target = $region13
    $region12: #{tpu_custom_call.1} parent=1 // pred_region
      %s44 = ssub.s32 256, 256
      %45 = vsyncadd [#allocation4], %s44
      %s47 = sshll.u32 [#allocation5], 4
      %s48 = int_to_ptr.vmem [resolvable:$true] %s47
      %50 = dma.vmem_to_hbm [thread:$0]  %s48, 256, %s1, [#allocation4]
    $region13: #{tpu_custom_call.1} parent=1 // pred_fallthru
      _
    // Predicated region
    $region14: #{tpu_custom_call.1} parent=1 // pred_check
      _
    $region15: #{tpu_custom_call.1} parent=1 // pred_check_branch
      %52 = sbr.rel (0) target = $region17
    $region16: #{tpu_custom_call.1} parent=1 // pred_region
      %53 = dma.done [#allocation4], 256
    $region17: #{tpu_custom_call.1} parent=1 // pred_fallthru
      _
    %54 = vsyncpa [#allocation3], 1
    %55 = vsyncpa [#allocation4], 1

</llo_original>
